<compile_context>
chip_gen: v7x
topology: tpu7x:2x2x1
jax: 0.10.0
libtpu: 0.0.40
codegen_flags: <defaults>
</compile_context>

<pallas_src>
import functools

import jax
import jax.numpy as jnp
import numpy as np
from jax.experimental import pallas as pl
from jax.experimental.pallas import tpu as pltpu

NEG_SLOPE = 0.01   # nn.LeakyReLU default negative_slope
BN_EPS = 1e-5      # nn.BatchNorm2d default eps


def _upblock_kernel(x_ref, w_ref, p_ref, o_ref, *, Wp, R):
    """One grid step == one image.

    x_ref : (1, Cm, Lp)   bf16, Lp = (H+3)*(W+2): spatially padded image,
                          flattened, with one extra (guard) bottom zero row.
    w_ref : (9, Cout, Cm) bf16, per-tap conv weights, tap k = dy*3 + dx.
    p_ref : (Cout, 3)     f32, columns = [conv bias, bn scale, bn shift].
    o_ref : (1, Cout, R)  f32, R = H*(W+2) slab outputs; the 2 junk columns per
                          row (w' = W, W+1) are dropped by the wrapper.
    """
    x = x_ref[0]                                     # (Cm, Lp): slab read once
    Re = R + 2                                       # extended partial width

    # Only 3 unaligned slices of the bf16 slab (one per kernel row dy).
    bases = [x[:, dy * Wp: dy * Wp + Re] for dy in range(3)]      # (Cm, Re)

    # dx-partials: parts[dx][:, r] = sum_dy  W[:, :, dy, dx] @ x[:, dy*Wp + r]
    parts = []
    for dx in range(3):
        g = None
        for dy in range(3):
            t = jnp.dot(w_ref[dy * 3 + dx], bases[dy],            # (Cout, Cm)@(Cm, Re)
                        preferred_element_type=jnp.float32)
            g = t if g is None else g + t
        parts.append(g)                                           # (Cout, Re) f32

    # Tap (dy, dx) of output column r reads slab element r + dy*Wp + dx, so the
    # dx shift is a static slice of the small f32 partial — no bf16 shifts.
    acc = parts[0][:, 0:R] + parts[1][:, 1:R + 1] + parts[2][:, 2:R + 2]

    bias = p_ref[:, 0:1]                             # (Cout, 1) f32
    scale = p_ref[:, 1:2]
    shift = p_ref[:, 2:3]
    y = acc + bias                                   # conv1 bias
    y = jnp.where(y >= 0, y, NEG_SLOPE * y)          # act1 = LeakyReLU (f32)
    y = y * scale + shift                            # bn1 (eval, running stats)
    o_ref[0] = y.astype(o_ref.dtype)                 # lane-dense store


def conv3x3_lrelu_bn(xflat, w_taps, eparams, *, Wp, R):
    N, Cm, Lp = xflat.shape
    Cout = w_taps.shape[1]
    kernel = functools.partial(_upblock_kernel, Wp=Wp, R=R)

    # VMEM budget: double-buffered in/out blocks + resident weights/params +
    # in-kernel temporaries (3 bf16 bases, 3 f32 partials, accumulator).
    blk_bytes = (2 * (Cm * Lp * 2 + Cout * R * 4)
                 + 2 * (w_taps.size * 2 + eparams.size * 4)
                 + 3 * Cm * (R + 2) * 2 + 4 * Cout * (R + 2) * 4)
    vmem_limit = int(min(max(blk_bytes + (2 << 20), 32 << 20), 64 << 20))

    return pl.pallas_call(
        kernel,
        out_shape=jax.ShapeDtypeStruct((N, Cout, R), jnp.float32),
        grid_spec=pltpu.PrefetchScalarGridSpec(
            num_scalar_prefetch=0,
            grid=(N,),                                              # 1 step / image
            in_specs=[
                pl.BlockSpec((1, Cm, Lp), lambda n: (n, 0, 0)),     # activations
                pl.BlockSpec((9, Cout, Cm), lambda n: (0, 0, 0)),   # weights, resident
                pl.BlockSpec((Cout, 3), lambda n: (0, 0)),          # bias|scale|shift
            ],
            out_specs=pl.BlockSpec((1, Cout, R), lambda n: (n, 0, 0)),
        ),
        compiler_params=pltpu.CompilerParams(
            dimension_semantics=("parallel",),       # v7x: batch across both TCs
            vmem_limit_bytes=vmem_limit),
    )(xflat, w_taps, eparams)


def pixel_shuffle(x, r=2):
    # torch.nn.PixelShuffle semantics on NCHW.
    N, C, H, W = x.shape
    c = C // (r * r)
    x = x.reshape(N, c, r, r, H, W)
    x = x.transpose(0, 1, 4, 2, 5, 3)
    return x.reshape(N, c, H * r, W * r)


def upblock_forward(x, skip, params):
    """x: (N, in_filters, H0, W0), skip: (N, 2*out_filters, 2H0, 2W0)  (NCHW)."""
    # Cast FIRST: every remaining wrapper copy (shuffle / concat / pad) then
    # moves half the bytes, and the matmul wants bf16 operands anyway.
    x = x.astype(jnp.bfloat16)
    skip = skip.astype(jnp.bfloat16)

    upA = pixel_shuffle(x, 2)                        # dropout1 -> identity (eval)
    upB = jnp.concatenate([upA, skip], axis=1)       # dropout2 -> identity (eval)

    N, Cm, H, W = upB.shape
    Wp = W + 2
    R = H * Wp                                       # slab outputs per image
    # Single fused pad: conv padding=1 on both axes, plus ONE extra zero row at
    # the bottom that doubles as the guard needed by the widest tap window
    # (dy=2, length R+2).  Flatten (H+3, Wp) -> pixels.  Tap (dy, dx) of output
    # pixel r = h*Wp + w' is xflat[:, r + dy*Wp + dx]; columns w' in {W, W+1}
    # per row are junk and dropped below.
    xpad = jnp.pad(upB, ((0, 0), (0, 0), (1, 2), (1, 1)))
    xflat = xpad.reshape(N, Cm, (H + 3) * Wp)

    w = params["conv_w"]                             # (Cout, Cm, 3, 3) PyTorch OIHW
    Cout = w.shape[0]
    w_taps = jnp.transpose(w, (2, 3, 0, 1)).reshape(9, Cout, Cm).astype(jnp.bfloat16)

    scale = params["bn_gamma"] / jnp.sqrt(params["bn_var"] + BN_EPS)
    shift = params["bn_beta"] - params["bn_mean"] * scale
    eparams = jnp.stack([params["conv_b"], scale, shift], axis=1)   # (Cout, 3) f32

    out = conv3x3_lrelu_bn(xflat, w_taps, eparams, Wp=Wp, R=R)      # (N, Cout, R)
    out = out.reshape(N, Cout, H, Wp)[:, :, :, :W]   # drop the 2 junk columns/row
    return out                                       # dropout3 -> identity; NCHW


def reference(x, skip, params):
    """Pure-JAX reference (same bf16 matmul operands, f32 accumulate/epilogue)."""
    upA = pixel_shuffle(x, 2)
    upB = jnp.concatenate([upA, skip], axis=1)
    y = jax.lax.conv_general_dilated(
        upB.astype(jnp.bfloat16), params["conv_w"].astype(jnp.bfloat16),
        window_strides=(1, 1), padding="SAME",
        dimension_numbers=("NCHW", "OIHW", "NCHW"),
        preferred_element_type=jnp.float32)
    y = y + params["conv_b"][None, :, None, None]
    y = jnp.where(y >= 0, y, NEG_SLOPE * y)
    scale = params["bn_gamma"] / jnp.sqrt(params["bn_var"] + BN_EPS)
    shift = params["bn_beta"] - params["bn_mean"] * scale
    return y * scale[None, :, None, None] + shift[None, :, None, None]


if __name__ == "__main__":
    key = jax.random.PRNGKey(0)
    k1, k2, k3, k4, k5, k6 = jax.random.split(key, 6)

    # Shapes consistent with the module: in_filters=16, out_filters=8
    # -> mid_filters = 16//4 + 2*8 = 20; skip has 2*out_filters channels at 2x
    # the spatial resolution of x.
    N, in_filters, out_filters, H0, W0 = 2, 16, 8, 8, 8
    mid_filters = in_filters // 4 + 2 * out_filters

    x = jax.random.normal(k1, (N, in_filters, H0, W0), jnp.float32)
    skip = jax.random.normal(k2, (N, 2 * out_filters, 2 * H0, 2 * W0), jnp.float32)

    params = {
        "conv_w": 0.1 * jax.random.normal(k3, (out_filters, mid_filters, 3, 3), jnp.float32),
        "conv_b": 0.1 * jax.random.normal(k4, (out_filters,), jnp.float32),
        "bn_gamma": 1.0 + 0.1 * jax.random.normal(k5, (out_filters,), jnp.float32),
        "bn_beta": 0.1 * jax.random.normal(k6, (out_filters,), jnp.float32),
        "bn_mean": jnp.zeros((out_filters,), jnp.float32),   # BatchNorm2d running stats
        "bn_var": jnp.ones((out_filters,), jnp.float32),
    }

    fwd = jax.jit(upblock_forward)
    out = jax.block_until_ready(fwd(x, skip, params))
    ref = jax.block_until_ready(reference(x, skip, params))

    assert out.shape == (N, out_filters, 2 * H0, 2 * W0)
    np.testing.assert_allclose(np.asarray(out), np.asarray(ref), rtol=1e-3, atol=1e-3)
    print("KERNEL_OK")
</pallas_src>

<mosaic_0001>
module attributes {stable_mosaic.version = 11 : i64} {
  func.func @_upblock_kernel(%arg0: i32, %arg1: memref<1x20x342xbf16, #tpu.memory_space<vmem>>, %arg2: memref<9x8x20xbf16, #tpu.memory_space<vmem>>, %arg3: memref<8x3xf32, #tpu.memory_space<vmem>>, %arg4: memref<1x8x288xf32, #tpu.memory_space<vmem>>) attributes {dimension_semantics = [#tpu.dimension_semantics<parallel>], iteration_bounds = array<i64: 2>, scalar_prefetch = 0 : i64, scratch_operands = 0 : i64, tpu.core_type = #tpu.core_type<tc>, window_params = [{transform_indices = @transform_0, window_bounds = array<i64: 1, 20, 342>}, {pipeline_mode = #tpu.pipeline_mode<synchronous>, transform_indices = @transform_1, window_bounds = array<i64: 9, 8, 20>}, {pipeline_mode = #tpu.pipeline_mode<synchronous>, transform_indices = @transform_2, window_bounds = array<i64: 8, 3>}, {transform_indices = @transform_3, window_bounds = array<i64: 1, 8, 288>}]} {
    %c0 = arith.constant 0 : index
    %c0_0 = arith.constant 0 : index
    %c0_1 = arith.constant 0 : index
    %0 = vector.load %arg1[%c0, %c0_0, %c0_1] : memref<1x20x342xbf16, #tpu.memory_space<vmem>>, vector<1x20x342xbf16>
    %1 = vector.shape_cast %0 : vector<1x20x342xbf16> to vector<20x342xbf16>
    %2 = vector.extract_strided_slice %1 {offsets = [0, 0], sizes = [20, 290], strides = [1, 1]} : vector<20x342xbf16> to vector<20x290xbf16>
    %3 = vector.extract_strided_slice %1 {offsets = [0, 18], sizes = [20, 290], strides = [1, 1]} : vector<20x342xbf16> to vector<20x290xbf16>
    %4 = vector.extract_strided_slice %1 {offsets = [0, 36], sizes = [20, 290], strides = [1, 1]} : vector<20x342xbf16> to vector<20x290xbf16>
    %c0_2 = arith.constant 0 : index
    %c0_3 = arith.constant 0 : index
    %c0_4 = arith.constant 0 : index
    %5 = vector.load %arg2[%c0_2, %c0_3, %c0_4] : memref<9x8x20xbf16, #tpu.memory_space<vmem>>, vector<1x8x20xbf16>
    %6 = vector.shape_cast %5 : vector<1x8x20xbf16> to vector<8x20xbf16>
    %cst = arith.constant dense<0.000000e+00> : vector<8x290xf32>
    %7 = tpu.matmul %6, %2, %cst {dimension_numbers = #tpu.dot_dimension_numbers<[1], [0], [0], [1], [0, 0, 1, 1], [], []>} : vector<8x20xbf16>, vector<20x290xbf16>, vector<8x290xf32> -> vector<8x290xf32>
    %c3 = arith.constant 3 : index
    %c0_5 = arith.constant 0 : index
    %c0_6 = arith.constant 0 : index
    %8 = vector.load %arg2[%c3, %c0_5, %c0_6] : memref<9x8x20xbf16, #tpu.memory_space<vmem>>, vector<1x8x20xbf16>
    %9 = vector.shape_cast %8 : vector<1x8x20xbf16> to vector<8x20xbf16>
    %cst_7 = arith.constant dense<0.000000e+00> : vector<8x290xf32>
    %10 = tpu.matmul %9, %3, %cst_7 {dimension_numbers = #tpu.dot_dimension_numbers<[1], [0], [0], [1], [0, 0, 1, 1], [], []>} : vector<8x20xbf16>, vector<20x290xbf16>, vector<8x290xf32> -> vector<8x290xf32>
    %11 = arith.addf %7, %10 : vector<8x290xf32>
    %c6 = arith.constant 6 : index
    %c0_8 = arith.constant 0 : index
    %c0_9 = arith.constant 0 : index
    %12 = vector.load %arg2[%c6, %c0_8, %c0_9] : memref<9x8x20xbf16, #tpu.memory_space<vmem>>, vector<1x8x20xbf16>
    %13 = vector.shape_cast %12 : vector<1x8x20xbf16> to vector<8x20xbf16>
    %cst_10 = arith.constant dense<0.000000e+00> : vector<8x290xf32>
    %14 = tpu.matmul %13, %4, %cst_10 {dimension_numbers = #tpu.dot_dimension_numbers<[1], [0], [0], [1], [0, 0, 1, 1], [], []>} : vector<8x20xbf16>, vector<20x290xbf16>, vector<8x290xf32> -> vector<8x290xf32>
    %15 = arith.addf %11, %14 : vector<8x290xf32>
    %c1 = arith.constant 1 : index
    %c0_11 = arith.constant 0 : index
    %c0_12 = arith.constant 0 : index
    %16 = vector.load %arg2[%c1, %c0_11, %c0_12] : memref<9x8x20xbf16, #tpu.memory_space<vmem>>, vector<1x8x20xbf16>
    %17 = vector.shape_cast %16 : vector<1x8x20xbf16> to vector<8x20xbf16>
    %cst_13 = arith.constant dense<0.000000e+00> : vector<8x290xf32>
    %18 = tpu.matmul %17, %2, %cst_13 {dimension_numbers = #tpu.dot_dimension_numbers<[1], [0], [0], [1], [0, 0, 1, 1], [], []>} : vector<8x20xbf16>, vector<20x290xbf16>, vector<8x290xf32> -> vector<8x290xf32>
    %c4 = arith.constant 4 : index
    %c0_14 = arith.constant 0 : index
    %c0_15 = arith.constant 0 : index
    %19 = vector.load %arg2[%c4, %c0_14, %c0_15] : memref<9x8x20xbf16, #tpu.memory_space<vmem>>, vector<1x8x20xbf16>
    %20 = vector.shape_cast %19 : vector<1x8x20xbf16> to vector<8x20xbf16>
    %cst_16 = arith.constant dense<0.000000e+00> : vector<8x290xf32>
    %21 = tpu.matmul %20, %3, %cst_16 {dimension_numbers = #tpu.dot_dimension_numbers<[1], [0], [0], [1], [0, 0, 1, 1], [], []>} : vector<8x20xbf16>, vector<20x290xbf16>, vector<8x290xf32> -> vector<8x290xf32>
    %22 = arith.addf %18, %21 : vector<8x290xf32>
    %c7 = arith.constant 7 : index
    %c0_17 = arith.constant 0 : index
    %c0_18 = arith.constant 0 : index
    %23 = vector.load %arg2[%c7, %c0_17, %c0_18] : memref<9x8x20xbf16, #tpu.memory_space<vmem>>, vector<1x8x20xbf16>
    %24 = vector.shape_cast %23 : vector<1x8x20xbf16> to vector<8x20xbf16>
    %cst_19 = arith.constant dense<0.000000e+00> : vector<8x290xf32>
    %25 = tpu.matmul %24, %4, %cst_19 {dimension_numbers = #tpu.dot_dimension_numbers<[1], [0], [0], [1], [0, 0, 1, 1], [], []>} : vector<8x20xbf16>, vector<20x290xbf16>, vector<8x290xf32> -> vector<8x290xf32>
    %26 = arith.addf %22, %25 : vector<8x290xf32>
    %c2 = arith.constant 2 : index
    %c0_20 = arith.constant 0 : index
    %c0_21 = arith.constant 0 : index
    %27 = vector.load %arg2[%c2, %c0_20, %c0_21] : memref<9x8x20xbf16, #tpu.memory_space<vmem>>, vector<1x8x20xbf16>
    %28 = vector.shape_cast %27 : vector<1x8x20xbf16> to vector<8x20xbf16>
    %cst_22 = arith.constant dense<0.000000e+00> : vector<8x290xf32>
    %29 = tpu.matmul %28, %2, %cst_22 {dimension_numbers = #tpu.dot_dimension_numbers<[1], [0], [0], [1], [0, 0, 1, 1], [], []>} : vector<8x20xbf16>, vector<20x290xbf16>, vector<8x290xf32> -> vector<8x290xf32>
    %c5 = arith.constant 5 : index
    %c0_23 = arith.constant 0 : index
    %c0_24 = arith.constant 0 : index
    %30 = vector.load %arg2[%c5, %c0_23, %c0_24] : memref<9x8x20xbf16, #tpu.memory_space<vmem>>, vector<1x8x20xbf16>
    %31 = vector.shape_cast %30 : vector<1x8x20xbf16> to vector<8x20xbf16>
    %cst_25 = arith.constant dense<0.000000e+00> : vector<8x290xf32>
    %32 = tpu.matmul %31, %3, %cst_25 {dimension_numbers = #tpu.dot_dimension_numbers<[1], [0], [0], [1], [0, 0, 1, 1], [], []>} : vector<8x20xbf16>, vector<20x290xbf16>, vector<8x290xf32> -> vector<8x290xf32>
    %33 = arith.addf %29, %32 : vector<8x290xf32>
    %c8 = arith.constant 8 : index
    %c0_26 = arith.constant 0 : index
    %c0_27 = arith.constant 0 : index
    %34 = vector.load %arg2[%c8, %c0_26, %c0_27] : memref<9x8x20xbf16, #tpu.memory_space<vmem>>, vector<1x8x20xbf16>
    %35 = vector.shape_cast %34 : vector<1x8x20xbf16> to vector<8x20xbf16>
    %cst_28 = arith.constant dense<0.000000e+00> : vector<8x290xf32>
    %36 = tpu.matmul %35, %4, %cst_28 {dimension_numbers = #tpu.dot_dimension_numbers<[1], [0], [0], [1], [0, 0, 1, 1], [], []>} : vector<8x20xbf16>, vector<20x290xbf16>, vector<8x290xf32> -> vector<8x290xf32>
    %37 = arith.addf %33, %36 : vector<8x290xf32>
    %38 = vector.extract_strided_slice %15 {offsets = [0, 0], sizes = [8, 288], strides = [1, 1]} : vector<8x290xf32> to vector<8x288xf32>
    %39 = vector.extract_strided_slice %26 {offsets = [0, 1], sizes = [8, 288], strides = [1, 1]} : vector<8x290xf32> to vector<8x288xf32>
    %40 = arith.addf %38, %39 : vector<8x288xf32>
    %41 = vector.extract_strided_slice %37 {offsets = [0, 2], sizes = [8, 288], strides = [1, 1]} : vector<8x290xf32> to vector<8x288xf32>
    %42 = arith.addf %40, %41 : vector<8x288xf32>
    %c0_29 = arith.constant 0 : index
    %c0_30 = arith.constant 0 : index
    %43 = vector.load %arg3[%c0_29, %c0_30] : memref<8x3xf32, #tpu.memory_space<vmem>>, vector<8x1xf32>
    %c0_31 = arith.constant 0 : index
    %c1_32 = arith.constant 1 : index
    %44 = vector.load %arg3[%c0_31, %c1_32] : memref<8x3xf32, #tpu.memory_space<vmem>>, vector<8x1xf32>
    %c0_33 = arith.constant 0 : index
    %c2_34 = arith.constant 2 : index
    %45 = vector.load %arg3[%c0_33, %c2_34] : memref<8x3xf32, #tpu.memory_space<vmem>>, vector<8x1xf32>
    %46 = vector.broadcast %43 : vector<8x1xf32> to vector<8x288xf32>
    %47 = arith.addf %42, %46 : vector<8x288xf32>
    %cst_35 = arith.constant 0.000000e+00 : f32
    %48 = vector.broadcast %cst_35 : f32 to vector<8x288xf32>
    %49 = arith.cmpf oge, %47, %48 : vector<8x288xf32>
    %cst_36 = arith.constant 0.00999999977 : f32
    %50 = vector.broadcast %cst_36 : f32 to vector<8x288xf32>
    %51 = arith.mulf %50, %47 : vector<8x288xf32>
    %52 = arith.select %49, %47, %51 : vector<8x288xi1>, vector<8x288xf32>
    %53 = vector.broadcast %44 : vector<8x1xf32> to vector<8x288xf32>
    %54 = arith.mulf %52, %53 : vector<8x288xf32>
    %55 = vector.broadcast %45 : vector<8x1xf32> to vector<8x288xf32>
    %56 = arith.addf %54, %55 : vector<8x288xf32>
    %c0_37 = arith.constant 0 : index
    %c0_38 = arith.constant 0 : index
    %c0_39 = arith.constant 0 : index
    %57 = vector.load %arg4[%c0_37, %c0_38, %c0_39] : memref<1x8x288xf32, #tpu.memory_space<vmem>>, vector<1x8x288xf32>
    %58 = vector.shape_cast %57 : vector<1x8x288xf32> to vector<8x288xf32>
    %59 = vector.shape_cast %56 : vector<8x288xf32> to vector<1x8x288xf32>
    tpu.vector_store %arg4[%c0_37, %c0_38, %c0_39], %59 {strides = array<i32>} : memref<1x8x288xf32, #tpu.memory_space<vmem>>, vector<1x8x288xf32>,
    return
  }
  func.func @transform_0(%arg0: i32) -> (i32, i32, i32) {
    %c0_i32 = arith.constant 0 : i32
    %c0_i32_0 = arith.constant 0 : i32
    %c0_i32_1 = arith.constant 0 : i32
    return %arg0, %c0_i32, %c0_i32_0 : i32, i32, i32
  }
  func.func @transform_1(%arg0: i32) -> (i32, i32, i32) {
    %c0_i32 = arith.constant 0 : i32
    %c0_i32_0 = arith.constant 0 : i32
    %c0_i32_1 = arith.constant 0 : i32
    %c0_i32_2 = arith.constant 0 : i32
    return %c0_i32, %c0_i32_0, %c0_i32_1 : i32, i32, i32
  }
  func.func @transform_2(%arg0: i32) -> (i32, i32) {
    %c0_i32 = arith.constant 0 : i32
    %c0_i32_0 = arith.constant 0 : i32
    %c0_i32_1 = arith.constant 0 : i32
    return %c0_i32, %c0_i32_0 : i32, i32
  }
  func.func @transform_3(%arg0: i32) -> (i32, i32, i32) {
    %c0_i32 = arith.constant 0 : i32
    %c0_i32_0 = arith.constant 0 : i32
    %c0_i32_1 = arith.constant 0 : i32
    return %arg0, %c0_i32, %c0_i32_0 : i32, i32, i32
  }
}

</mosaic_0001>

<llo_original>
// kernel: upblock_forward.1
$region0: #{upblock_forward.1}
  #allocation0 [shape = 'u32[]', space=smem, size = 0x4, offset = 0x4, fixed_abs, tag = 'smem constant byte address 0x4 - core index']
  #allocation1 [shape = 'u32[144,128]{1,0:T(1,128)}', space=vmem, size = 0x12000, scoped, tag = 'internal scratch']
  %s0 = inlined_call_operand.vmem [shape: bf16[2,20,342], index: 0, kind: input, shape index: {}]
  %s1 = inlined_call_operand.vmem [shape: bf16[9,8,20], index: 1, kind: input, shape index: {}]
  %s2 = inlined_call_operand.vmem [shape: f32[8,3], index: 2, kind: input, shape index: {}]
  %s3 = inlined_call_operand.vmem [shape: f32[2,8,288], index: 3, kind: output, shape index: {}]
  %s4 = sld [smem:[#allocation0]]
  $region45: #{upblock_forward.1} parent=0
    _
  %s6 = ssub.s32 1, %s4
  %s7 = scalar_select 0, %s6, %s4
  loop: start=0, step=1, limit=4
  $region2: #{upblock_forward.1} parent=0 // loop_pre_header
    _
  $region3: #{upblock_forward.1} parent=0 // loop_header
    %s9 = sphi 0, %s13
    %p10 = scmp.ge.s32.totalorder %s9, 4
    %s19 = sphi 0, %s21
    %s22 = sphi 0, %s19
    %s23 = sphi 0, %s22
    %s39 = sphi 0, %s23
    %s43 = sphi 0, %s43
    %s45 = sphi 0, %s43
    %s46 = sphi 0, %s45
    %s60 = sphi 0, %s46
    %s64 = sphi 0, %s64
    %s66 = sphi 0, %s64
    %s67 = sphi 0, %s66
    %s81 = sphi 0, %s67
    %s87 = sphi 0, %s89
    %s90 = sphi 0, %s87
    %s91 = sphi 0, %s90
    %s107 = sphi 0, %s91
  $region4: #{upblock_forward.1} parent=0 // loop_header_branch
    %12 = sbr.rel (%p10) target = $region8
  $region5: #{upblock_forward.1} parent=0 // loop_body
    %s14 = ssub.s32 %s9, 1
    %s15 = ssub.s32 %s9, 2
    %s16 = sadd.s32 %s9, 1
    %s17 = ssub.s32 %s9, %s16
    %p18 = scmp.eq.s32.totalorder %s17, 0
    %s20 = sadd.s32 %s19, 1
    %s21 = scalar_select %p18, %s19, %s20
    %p24 = pneg %p18
    %p25 = scmp.eq.s32.totalorder %s9, 1
    %p26 = por %p24, %p25
    %p27 = scmp.ne.s32.totalorder %s19, %s22
    %p28 = scmp.eq.s32.totalorder %s9, 0
    %p29 = por %p27, %p28
    %p30 = scmp.ne.s32.totalorder %s19, %s22
    %p31 = scmp.eq.s32.totalorder %s14, 1
    %p32 = por %p30, %p31
    %p33 = scmp.ne.s32.totalorder %s22, %s23
    %p34 = scmp.eq.s32.totalorder %s14, 0
    %p35 = por %p33, %p34
    %p36 = scmp.ne.s32.totalorder %s22, %s23
    %p37 = scmp.eq.s32.totalorder %s15, 1
    %p38 = por %p36, %p37
    %p40 = scmp.ne.s32.totalorder %s23, %s39
    %p41 = scmp.eq.s32.totalorder %s15, 0
    %p42 = por %p40, %p41
    %s44 = sadd.s32 %s43, 1
    %p47 = scmp.eq.s32.totalorder %s9, 1
    %p48 = scmp.ne.s32.totalorder %s43, %s45
    %p49 = scmp.eq.s32.totalorder %s9, 0
    %p50 = por %p48, %p49
    %p51 = scmp.ne.s32.totalorder %s43, %s45
    %p52 = scmp.eq.s32.totalorder %s14, 1
    %p53 = por %p51, %p52
    %p54 = scmp.ne.s32.totalorder %s45, %s46
    %p55 = scmp.eq.s32.totalorder %s14, 0
    %p56 = por %p54, %p55
    %p57 = scmp.ne.s32.totalorder %s45, %s46
    %p58 = scmp.eq.s32.totalorder %s15, 1
    %p59 = por %p57, %p58
    %p61 = scmp.ne.s32.totalorder %s46, %s60
    %p62 = scmp.eq.s32.totalorder %s15, 0
    %p63 = por %p61, %p62
    %s65 = sadd.s32 %s64, 1
    %p68 = scmp.eq.s32.totalorder %s9, 1
    %p69 = scmp.ne.s32.totalorder %s64, %s66
    %p70 = scmp.eq.s32.totalorder %s9, 0
    %p71 = por %p69, %p70
    %p72 = scmp.ne.s32.totalorder %s64, %s66
    %p73 = scmp.eq.s32.totalorder %s14, 1
    %p74 = por %p72, %p73
    %p75 = scmp.ne.s32.totalorder %s66, %s67
    %p76 = scmp.eq.s32.totalorder %s14, 0
    %p77 = por %p75, %p76
    %p78 = scmp.ne.s32.totalorder %s66, %s67
    %p79 = scmp.eq.s32.totalorder %s15, 1
    %p80 = por %p78, %p79
    %p82 = scmp.ne.s32.totalorder %s67, %s81
    %p83 = scmp.eq.s32.totalorder %s15, 0
    %p84 = por %p82, %p83
    %s85 = ssub.s32 %s9, %s16
    %p86 = scmp.eq.s32.totalorder %s85, 0
    %s88 = sadd.s32 %s87, 1
    %s89 = scalar_select %p86, %s87, %s88
    %p92 = pneg %p86
    %p93 = scmp.eq.s32.totalorder %s9, 1
    %p94 = por %p92, %p93
    %p95 = scmp.ne.s32.totalorder %s87, %s90
    %p96 = scmp.eq.s32.totalorder %s9, 0
    %p97 = por %p95, %p96
    %p98 = scmp.ne.s32.totalorder %s87, %s90
    %p99 = scmp.eq.s32.totalorder %s14, 1
    %p100 = por %p98, %p99
    %p101 = scmp.ne.s32.totalorder %s90, %s91
    %p102 = scmp.eq.s32.totalorder %s14, 0
    %p103 = por %p101, %p102
    %p104 = scmp.ne.s32.totalorder %s90, %s91
    %p105 = scmp.eq.s32.totalorder %s15, 1
    %p106 = por %p104, %p105
    %p108 = scmp.ne.s32.totalorder %s91, %s107
    %p109 = scmp.eq.s32.totalorder %s15, 0
    %p110 = por %p108, %p109
    %p111 = scmp.le.s32.totalorder 1, %s9
    %p112 = scmp.lt.s32.totalorder %s9, 3
    %p113 = pnand %p111, %p112
    %p114 = pneg %p113
    // Predicated region
    $region9: #{upblock_forward.1} parent=5 // pred_check
      _
    $region10: #{upblock_forward.1} parent=5 // pred_check_branch
      %116 = sbr.rel (%p113) target = $region12
    $region11: #{upblock_forward.1} parent=5 // pred_region
      %s117 = ssub.s32 %s9, 1
      // Predicated region
      $region13: #{upblock_forward.1} parent=11 // pred_check
        %p118 = pneg %p56
      $region14: #{upblock_forward.1} parent=11 // pred_check_branch
        %120 = sbr.rel (%p118) target = $region16
      $region15: #{upblock_forward.1} parent=11 // pred_region
        _
      $region16: #{upblock_forward.1} parent=11 // pred_fallthru
        _
      // Predicated region
      $region17: #{upblock_forward.1} parent=11 // pred_check
        %p121 = pneg %p77
      $region18: #{upblock_forward.1} parent=11 // pred_check_branch
        %123 = sbr.rel (%p121) target = $region20
      $region19: #{upblock_forward.1} parent=11 // pred_region
        _
      $region20: #{upblock_forward.1} parent=11 // pred_fallthru
        _
    $region12: #{upblock_forward.1} parent=5 // pred_fallthru
      _
    %p124 = scmp.lt.s32.totalorder %s9, 2
    // Predicated region
    $region21: #{upblock_forward.1} parent=5 // pred_check
      %p125 = pneg %p124
    $region22: #{upblock_forward.1} parent=5 // pred_check_branch
      %127 = sbr.rel (%p125) target = $region24
    $region23: #{upblock_forward.1} parent=5 // pred_region
      // Predicated region
      $region25: #{upblock_forward.1} parent=23 // pred_check
        %p128 = pneg %p29
      $region26: #{upblock_forward.1} parent=23 // pred_check_branch
        %130 = sbr.rel (%p128) target = $region28
      $region27: #{upblock_forward.1} parent=23 // pred_region
        %p131 = scmp.lt.s32.totalorder %s9, 1
        %s132 = scalar_select %p131, %s9, 1
        %s133 = smul.addr %s132, 9
        %s134 = smul.addr %s133, 4
        %s135 = scalar_lea.vmem %s0, %s134
      $region28: #{upblock_forward.1} parent=23 // pred_fallthru
        _
    $region24: #{upblock_forward.1} parent=5 // pred_fallthru
      _
    %p136 = scmp.le.s32.totalorder 1, %s9
    %p137 = scmp.lt.s32.totalorder %s9, 3
    %p138 = pnand %p136, %p137
    %p139 = pneg %p138
    // Predicated region
    $region29: #{upblock_forward.1} parent=5 // pred_check
      _
    $region30: #{upblock_forward.1} parent=5 // pred_check_branch
      %141 = sbr.rel (%p138) target = $region32
    $region31: #{upblock_forward.1} parent=5 // pred_region
      %s142 = ssub.s32 %s9, 1
      %p143 = scmp.lt.s32.totalorder %s14, 1
      %s144 = scalar_select %p143, %s14, 1
      %s145 = smul.addr %s144, 9
      %s146 = smul.addr %s145, 4
      %s147 = scalar_lea.vmem %s0, %s146
      %p148 = pneg %p35
      %p149 = pneg %p32
      %p150 = pneg %p56
      %p151 = pneg %p53
      %p152 = pneg %p77
      %p153 = pneg %p74
      %p154 = pneg %p103
      %p155 = pneg %p100
      %p156 = scmp.lt.s32.totalorder %s14, 1
      %s157 = scalar_select %p156, %s14, 1
      %s158 = smul.addr %s157, 3
      %s159 = smul.addr %s158, 8
      %s160 = scalar_lea.vmem %s3, %s159
      %p161 = scmp.lt.s32.totalorder %s14, 1
      %s162 = scalar_select %p161, %s14, 1
      %s163 = smul.addr %s162, 9
      %s164 = smul.addr %s163, 4
      %s165 = scalar_lea.vmem %s0, %s164
      %p166 = scmp.lt.s32.totalorder %s14, 1
      %s167 = scalar_select %p166, %s14, 1
      %s168 = smul.addr %s167, 3
      %s169 = smul.addr %s168, 8
      %s170 = scalar_lea.vmem %s3, %s169
      %v172 = vld [vmem:[%s165] sm:$0xff]
      %v173 = vld [vmem:[%s165 + $0x8] sm:$0xf]
      %v174 = vld [vmem:[%s165 + $0xc] sm:$0xff]
      %v175 = vld [vmem:[%s165 + $0x14] sm:$0xf]
      %v176 = vld [vmem:[%s165 + $0x18] sm:$0x33]
      %v177 = vld [vmem:[%s165 + $0x20] sm:$0x3]
      %v178 = vld [vmem:[%s1] sm:$0xf]
      %s179 = scalar_lea.vmem %s1, 12
      %v180 = vld [vmem:[%s179] sm:$0xf]
      %v187 = vunpack.c.l.b16 %v172
      %v188 = vunpack.c.h.b16 %v172
      %v189 = vunpack.c.l.b16 %v173
      %v190 = vunpack.c.l.b16 %v174
      %v191 = vunpack.c.h.b16 %v174
      %v192 = vunpack.c.l.b16 %v175
      %v193 = vunpack.c.l.b16 %v176
      %v194 = vunpack.c.h.b16 %v176
      %v195 = vunpack.c.l.b16 %v177
      %v196 = vpack.c.b16 %v190, %v187
      %v197 = vpack.c.b16 %v191, %v188
      %v198 = vpack.c.b16 %v192, %v189
      %v199 = vpack.c.b16 %v193, %v193
      %v200 = vpack.c.b16 %v194, %v194
      %v201 = vpack.c.b16 %v195, %v195
      %202 = vrot.lane.b32.xlu0 %v196, 110
      %v203 = vpop.permute.xlu0 %202
      %204 = vrot.lane.b32.xlu0 %v197, 110
      %v205 = vpop.permute.xlu0 %204
      %206 = vrot.lane.b32.xlu0 %v198, 110
      %v207 = vpop.permute.xlu0 %206
      %208 = vrot.lane.b32.xlu0 %v199, 110
      %v209 = vpop.permute.xlu0 %208
      %210 = vrot.lane.b32.xlu0 %v200, 110
      %v211 = vpop.permute.xlu0 %210
      %212 = vrot.lane.b32.xlu0 %v201, 110
      %v213 = vpop.permute.xlu0 %212
      %vm214 = vcmask 900096
      %v215 = vsel %vm214, %v203, %v205
      %v216 = vsel %vm214, %v205, %v207
      %v217 = vsel %vm214, %v209, %v211
      %v218 = vsel %vm214, %v211, %v213
      %vm222 = vcmask 162816
      %v224 = vsel %vm222, %v180, 0
      %vm226 = vcmask 1041408
      %v228 = vsel %vm226, %v217, 0
      %v231 = vsel %vm226, %v218, 0
      %v234 = vsel %vm226, %v213, 0
      %236 = vmatprep.subr.bf16.mxu0 %v216
      %237 = vmatpush1.bf16.msra.mxu0 %v215
      %238 = vmatprep.subr.bf16.mxu0 %v231
      %239 = vmatpush1.bf16.msra.mxu0 %v228
      %240 = vmatprep.subr.bf16.mxu0 0
      %241 = vmatpush1.bf16.msra.mxu0 0
      %242 = vmatprep.subr.bf16.mxu0 0
      %243 = vmatpush1.bf16.msra.mxu0 0
      %244 = vmatprep.subr.bf16.mxu0 0
      %245 = vmatpush1.bf16.msra.mxu0 0
      %246 = vmatprep.subr.bf16.mxu0 0
      %247 = vmatpush1.bf16.msra.mxu0 0
      %248 = vmatprep.subr.bf16.mxu0 0
      %249 = vmatpush1.bf16.msra.mxu0 0
      %250 = vmatprep.subr.bf16.mxu0 0
      %251 = vmatpush1.bf16.msra.mxu0 0
      %252 = vmatprep.subr.bf16.mxu0 0
      %253 = vmatpush1.bf16.msra.mxu0 0
      %254 = vmatprep.subr.bf16.mxu0 0
      %255 = vmatpush1.bf16.msra.mxu0 0
      %256 = vmatprep.subr.bf16.mxu0 0
      %257 = vmatpush1.bf16.msra.mxu0 0
      %258 = vmatprep.subr.bf16.mxu0 0
      %259 = vmatpush1.bf16.msra.mxu0 0
      %260 = vmatprep.subr.bf16.mxu0 0
      %261 = vmatpush1.bf16.msra.mxu0 0
      %262 = vmatprep.subr.bf16.mxu0 0
      %263 = vmatpush1.bf16.msra.mxu0 0
      %264 = vmatprep.subr.bf16.mxu0 0
      %265 = vmatpush1.bf16.msra.mxu0 0
      %266 = vmatprep.subr.bf16.mxu0 0
      %267 = vmatpush1.bf16.msra.mxu0 0
      %268 = vmatprep.mubr.bf16.mxu0 0
      %269 = vmatmul.mubr.bf16.gmra.mrb[0].mxu0 %v224
      %v270 = vpop.f32.mrb[0].mxu0
      %v271 = vadd.f32 0.0, %v270
      %v272 = vpop.f32.mrb[0].mxu0
      %v273 = vadd.f32 0.0, %v272
      %v274 = vpop.f32.mrb[0].mxu0
      %v275 = vpop.f32.mrb[0].mxu0
      %276 = vdwg.mxu0
      %277 = vmatprep.subr.bf16.mxu0 0
      %278 = vmatpush1.bf16.msra.mxu0 %v207
      %279 = vmatprep.subr.bf16.mxu0 0
      %280 = vmatpush1.bf16.msra.mxu0 %v234
      %281 = vmatprep.subr.bf16.mxu0 0
      %282 = vmatpush1.bf16.msra.mxu0 0
      %283 = vmatprep.subr.bf16.mxu0 0
      %284 = vmatpush1.bf16.msra.mxu0 0
      %285 = vmatprep.subr.bf16.mxu0 0
      %286 = vmatpush1.bf16.msra.mxu0 0
      %287 = vmatprep.subr.bf16.mxu0 0
      %288 = vmatpush1.bf16.msra.mxu0 0
      %289 = vmatprep.subr.bf16.mxu0 0
      %290 = vmatpush1.bf16.msra.mxu0 0
      %291 = vmatprep.subr.bf16.mxu0 0
      %292 = vmatpush1.bf16.msra.mxu0 0
      %293 = vmatprep.subr.bf16.mxu0 0
      %294 = vmatpush1.bf16.msra.mxu0 0
      %295 = vmatprep.subr.bf16.mxu0 0
      %296 = vmatpush1.bf16.msra.mxu0 0
      %297 = vmatprep.subr.bf16.mxu0 0
      %298 = vmatpush1.bf16.msra.mxu0 0
      %299 = vmatprep.subr.bf16.mxu0 0
      %300 = vmatpush1.bf16.msra.mxu0 0
      %301 = vmatprep.subr.bf16.mxu0 0
      %302 = vmatpush1.bf16.msra.mxu0 0
      %303 = vmatprep.subr.bf16.mxu0 0
      %304 = vmatpush1.bf16.msra.mxu0 0
      %305 = vmatprep.subr.bf16.mxu0 0
      %306 = vmatpush1.bf16.msra.mxu0 0
      %307 = vmatprep.subr.bf16.mxu0 0
      %308 = vmatpush1.bf16.msra.mxu0 0
      %309 = vmatprep.mubr.bf16.mxu0 0
      %310 = vmatmul.mubr.bf16.gmra.mrb[0].mxu0 %v224
      %v311 = vpop.f32.mrb[0].mxu0
      %v312 = vadd.f32 0.0, %v311
      %v313 = vpop.f32.mrb[0].mxu0
      %v314 = vpop.f32.mrb[0].mxu0
      %v315 = vpop.f32.mrb[0].mxu0
      %316 = vdwg.mxu0
      %v321 = vsel %vm222, %v178, 0
      %v324 = vsel %vm226, %v199, 0
      %v327 = vsel %vm226, %v200, 0
      %v330 = vsel %vm226, %v201, 0
      %332 = vmatprep.subr.bf16.mxu0 %v197
      %333 = vmatpush1.bf16.msra.mxu0 %v196
      %334 = vmatprep.subr.bf16.mxu0 %v327
      %335 = vmatpush1.bf16.msra.mxu0 %v324
      %336 = vmatprep.subr.bf16.mxu0 0
      %337 = vmatpush1.bf16.msra.mxu0 0
      %338 = vmatprep.subr.bf16.mxu0 0
      %339 = vmatpush1.bf16.msra.mxu0 0
      %340 = vmatprep.subr.bf16.mxu0 0
      %341 = vmatpush1.bf16.msra.mxu0 0
      %342 = vmatprep.subr.bf16.mxu0 0
      %343 = vmatpush1.bf16.msra.mxu0 0
      %344 = vmatprep.subr.bf16.mxu0 0
      %345 = vmatpush1.bf16.msra.mxu0 0
      %346 = vmatprep.subr.bf16.mxu0 0
      %347 = vmatpush1.bf16.msra.mxu0 0
      %348 = vmatprep.subr.bf16.mxu0 0
      %349 = vmatpush1.bf16.msra.mxu0 0
      %350 = vmatprep.subr.bf16.mxu0 0
      %351 = vmatpush1.bf16.msra.mxu0 0
      %352 = vmatprep.subr.bf16.mxu0 0
      %353 = vmatpush1.bf16.msra.mxu0 0
      %354 = vmatprep.subr.bf16.mxu0 0
      %355 = vmatpush1.bf16.msra.mxu0 0
      %356 = vmatprep.subr.bf16.mxu0 0
      %357 = vmatpush1.bf16.msra.mxu0 0
      %358 = vmatprep.subr.bf16.mxu0 0
      %359 = vmatpush1.bf16.msra.mxu0 0
      %360 = vmatprep.subr.bf16.mxu0 0
      %361 = vmatpush1.bf16.msra.mxu0 0
      %362 = vmatprep.subr.bf16.mxu0 0
      %363 = vmatpush1.bf16.msra.mxu0 0
      %364 = vmatprep.mubr.bf16.mxu0 0
      %365 = vmatmul.mubr.bf16.gmra.mrb[0].mxu0 %v321
      %v366 = vpop.f32.mrb[0].mxu0
      %v367 = vadd.f32 %v271, %v366
      %v368 = vpop.f32.mrb[0].mxu0
      %v369 = vadd.f32 %v273, %v368
      %v370 = vpop.f32.mrb[0].mxu0
      %v371 = vpop.f32.mrb[0].mxu0
      %372 = vdwg.mxu0
      %373 = vmatprep.subr.bf16.mxu0 0
      %374 = vmatpush1.bf16.msra.mxu0 %v198
      %375 = vmatprep.subr.bf16.mxu0 0
      %376 = vmatpush1.bf16.msra.mxu0 %v330
      %377 = vmatprep.subr.bf16.mxu0 0
      %378 = vmatpush1.bf16.msra.mxu0 0
      %379 = vmatprep.subr.bf16.mxu0 0
      %380 = vmatpush1.bf16.msra.mxu0 0
      %381 = vmatprep.subr.bf16.mxu0 0
      %382 = vmatpush1.bf16.msra.mxu0 0
      %383 = vmatprep.subr.bf16.mxu0 0
      %384 = vmatpush1.bf16.msra.mxu0 0
      %385 = vmatprep.subr.bf16.mxu0 0
      %386 = vmatpush1.bf16.msra.mxu0 0
      %387 = vmatprep.subr.bf16.mxu0 0
      %388 = vmatpush1.bf16.msra.mxu0 0
      %389 = vmatprep.subr.bf16.mxu0 0
      %390 = vmatpush1.bf16.msra.mxu0 0
      %391 = vmatprep.subr.bf16.mxu0 0
      %392 = vmatpush1.bf16.msra.mxu0 0
      %393 = vmatprep.subr.bf16.mxu0 0
      %394 = vmatpush1.bf16.msra.mxu0 0
      %395 = vmatprep.subr.bf16.mxu0 0
      %396 = vmatpush1.bf16.msra.mxu0 0
      %397 = vmatprep.subr.bf16.mxu0 0
      %398 = vmatpush1.bf16.msra.mxu0 0
      %399 = vmatprep.subr.bf16.mxu0 0
      %400 = vmatpush1.bf16.msra.mxu0 0
      %401 = vmatprep.subr.bf16.mxu0 0
      %402 = vmatpush1.bf16.msra.mxu0 0
      %403 = vmatprep.subr.bf16.mxu0 0
      %404 = vmatpush1.bf16.msra.mxu0 0
      %405 = vmatprep.mubr.bf16.mxu0 0
      %406 = vmatmul.mubr.bf16.gmra.mrb[0].mxu0 %v321
      %v407 = vpop.f32.mrb[0].mxu0
      %v408 = vadd.f32 %v312, %v407
      %v409 = vpop.f32.mrb[0].mxu0
      %v410 = vpop.f32.mrb[0].mxu0
      %v411 = vpop.f32.mrb[0].mxu0
      %412 = vdwg.mxu0
      %s413 = scalar_lea.vmem %s1, 24
      %v414 = vld [vmem:[%s413] sm:$0xf]
      %415 = vrot.lane.b32.xlu0 %v196, 92
      %v416 = vpop.permute.xlu0 %415
      %417 = vrot.lane.b32.xlu0 %v197, 92
      %v418 = vpop.permute.xlu0 %417
      %419 = vrot.lane.b32.xlu0 %v198, 92
      %v420 = vpop.permute.xlu0 %419
      %421 = vrot.lane.b32.xlu0 %v199, 92
      %v422 = vpop.permute.xlu0 %421
      %423 = vrot.lane.b32.xlu0 %v200, 92
      %v424 = vpop.permute.xlu0 %423
      %425 = vrot.lane.b32.xlu0 %v201, 92
      %v426 = vpop.permute.xlu0 %425
      %vm427 = vcmask 752640
      %v428 = vsel %vm427, %v416, %v418
      %v429 = vsel %vm427, %v418, %v420
      %v430 = vsel %vm427, %v422, %v424
      %v431 = vsel %vm427, %v424, %v426
      %v436 = vsel %vm222, %v414, 0
      %v439 = vsel %vm226, %v430, 0
      %v442 = vsel %vm226, %v431, 0
      %v445 = vsel %vm226, %v426, 0
      %447 = vmatprep.subr.bf16.mxu0 %v429
      %448 = vmatpush1.bf16.msra.mxu0 %v428
      %449 = vmatprep.subr.bf16.mxu0 %v442
      %450 = vmatpush1.bf16.msra.mxu0 %v439
      %451 = vmatprep.subr.bf16.mxu0 0
      %452 = vmatpush1.bf16.msra.mxu0 0
      %453 = vmatprep.subr.bf16.mxu0 0
      %454 = vmatpush1.bf16.msra.mxu0 0
      %455 = vmatprep.subr.bf16.mxu0 0
      %456 = vmatpush1.bf16.msra.mxu0 0
      %457 = vmatprep.subr.bf16.mxu0 0
      %458 = vmatpush1.bf16.msra.mxu0 0
      %459 = vmatprep.subr.bf16.mxu0 0
      %460 = vmatpush1.bf16.msra.mxu0 0
      %461 = vmatprep.subr.bf16.mxu0 0
      %462 = vmatpush1.bf16.msra.mxu0 0
      %463 = vmatprep.subr.bf16.mxu0 0
      %464 = vmatpush1.bf16.msra.mxu0 0
      %465 = vmatprep.subr.bf16.mxu0 0
      %466 = vmatpush1.bf16.msra.mxu0 0
      %467 = vmatprep.subr.bf16.mxu0 0
      %468 = vmatpush1.bf16.msra.mxu0 0
      %469 = vmatprep.subr.bf16.mxu0 0
      %470 = vmatpush1.bf16.msra.mxu0 0
      %471 = vmatprep.subr.bf16.mxu0 0
      %472 = vmatpush1.bf16.msra.mxu0 0
      %473 = vmatprep.subr.bf16.mxu0 0
      %474 = vmatpush1.bf16.msra.mxu0 0
      %475 = vmatprep.subr.bf16.mxu0 0
      %476 = vmatpush1.bf16.msra.mxu0 0
      %477 = vmatprep.subr.bf16.mxu0 0
      %478 = vmatpush1.bf16.msra.mxu0 0
      %479 = vmatprep.mubr.bf16.mxu0 0
      %480 = vmatmul.mubr.bf16.gmra.mrb[0].mxu0 %v436
      %v481 = vpop.f32.mrb[0].mxu0
      %v482 = vadd.f32 0.0, %v481
      %v483 = vpop.f32.mrb[0].mxu0
      %v484 = vadd.f32 0.0, %v483
      %v485 = vpop.f32.mrb[0].mxu0
      %v486 = vpop.f32.mrb[0].mxu0
      %487 = vdwg.mxu0
      %488 = vmatprep.subr.bf16.mxu0 0
      %489 = vmatpush1.bf16.msra.mxu0 %v420
      %490 = vmatprep.subr.bf16.mxu0 0
      %491 = vmatpush1.bf16.msra.mxu0 %v445
      %492 = vmatprep.subr.bf16.mxu0 0
      %493 = vmatpush1.bf16.msra.mxu0 0
      %494 = vmatprep.subr.bf16.mxu0 0
      %495 = vmatpush1.bf16.msra.mxu0 0
      %496 = vmatprep.subr.bf16.mxu0 0
      %497 = vmatpush1.bf16.msra.mxu0 0
      %498 = vmatprep.subr.bf16.mxu0 0
      %499 = vmatpush1.bf16.msra.mxu0 0
      %500 = vmatprep.subr.bf16.mxu0 0
      %501 = vmatpush1.bf16.msra.mxu0 0
      %502 = vmatprep.subr.bf16.mxu0 0
      %503 = vmatpush1.bf16.msra.mxu0 0
      %504 = vmatprep.subr.bf16.mxu0 0
      %505 = vmatpush1.bf16.msra.mxu0 0
      %506 = vmatprep.subr.bf16.mxu0 0
      %507 = vmatpush1.bf16.msra.mxu0 0
      %508 = vmatprep.subr.bf16.mxu0 0
      %509 = vmatpush1.bf16.msra.mxu0 0
      %510 = vmatprep.subr.bf16.mxu0 0
      %511 = vmatpush1.bf16.msra.mxu0 0
      %512 = vmatprep.subr.bf16.mxu0 0
      %513 = vmatpush1.bf16.msra.mxu0 0
      %514 = vmatprep.subr.bf16.mxu0 0
      %515 = vmatpush1.bf16.msra.mxu0 0
      %516 = vmatprep.subr.bf16.mxu0 0
      %517 = vmatpush1.bf16.msra.mxu0 0
      %518 = vmatprep.subr.bf16.mxu0 0
      %519 = vmatpush1.bf16.msra.mxu0 0
      %520 = vmatprep.mubr.bf16.mxu0 0
      %521 = vmatmul.mubr.bf16.gmra.mrb[0].mxu0 %v436
      %v522 = vpop.f32.mrb[0].mxu0
      %v523 = vadd.f32 0.0, %v522
      %v524 = vpop.f32.mrb[0].mxu0
      %v525 = vpop.f32.mrb[0].mxu0
      %v526 = vpop.f32.mrb[0].mxu0
      %527 = vdwg.mxu0
      %v528 = vadd.f32 %v367, %v482
      %v529 = vadd.f32 %v369, %v484
      %v530 = vadd.f32 %v408, %v523
      %s531 = scalar_lea.vmem %s1, 4
      %v532 = vld [vmem:[%s531] sm:$0xf]
      %s533 = scalar_lea.vmem %s1, 16
      %v534 = vld [vmem:[%s533] sm:$0xf]
      %v536 = vsel %vm222, %v534, 0
      %538 = vmatprep.subr.bf16.mxu0 %v216
      %539 = vmatpush1.bf16.msra.mxu0 %v215
      %540 = vmatprep.subr.bf16.mxu0 %v231
      %541 = vmatpush1.bf16.msra.mxu0 %v228
      %542 = vmatprep.subr.bf16.mxu0 0
      %543 = vmatpush1.bf16.msra.mxu0 0
      %544 = vmatprep.subr.bf16.mxu0 0
      %545 = vmatpush1.bf16.msra.mxu0 0
      %546 = vmatprep.subr.bf16.mxu0 0
      %547 = vmatpush1.bf16.msra.mxu0 0
      %548 = vmatprep.subr.bf16.mxu0 0
      %549 = vmatpush1.bf16.msra.mxu0 0
      %550 = vmatprep.subr.bf16.mxu0 0
      %551 = vmatpush1.bf16.msra.mxu0 0
      %552 = vmatprep.subr.bf16.mxu0 0
      %553 = vmatpush1.bf16.msra.mxu0 0
      %554 = vmatprep.subr.bf16.mxu0 0
      %555 = vmatpush1.bf16.msra.mxu0 0
      %556 = vmatprep.subr.bf16.mxu0 0
      %557 = vmatpush1.bf16.msra.mxu0 0
      %558 = vmatprep.subr.bf16.mxu0 0
      %559 = vmatpush1.bf16.msra.mxu0 0
      %560 = vmatprep.subr.bf16.mxu0 0
      %561 = vmatpush1.bf16.msra.mxu0 0
      %562 = vmatprep.subr.bf16.mxu0 0
      %563 = vmatpush1.bf16.msra.mxu0 0
      %564 = vmatprep.subr.bf16.mxu0 0
      %565 = vmatpush1.bf16.msra.mxu0 0
      %566 = vmatprep.subr.bf16.mxu0 0
      %567 = vmatpush1.bf16.msra.mxu0 0
      %568 = vmatprep.subr.bf16.mxu0 0
      %569 = vmatpush1.bf16.msra.mxu0 0
      %570 = vmatprep.mubr.bf16.mxu0 0
      %571 = vmatmul.mubr.bf16.gmra.mrb[0].mxu0 %v536
      %v572 = vpop.f32.mrb[0].mxu0
      %v573 = vadd.f32 0.0, %v572
      %v574 = vpop.f32.mrb[0].mxu0
      %v575 = vadd.f32 0.0, %v574
      %v576 = vpop.f32.mrb[0].mxu0
      %v577 = vpop.f32.mrb[0].mxu0
      %578 = vdwg.mxu0
      %579 = vmatprep.subr.bf16.mxu0 0
      %580 = vmatpush1.bf16.msra.mxu0 %v207
      %581 = vmatprep.subr.bf16.mxu0 0
      %582 = vmatpush1.bf16.msra.mxu0 %v234
      %583 = vmatprep.subr.bf16.mxu0 0
      %584 = vmatpush1.bf16.msra.mxu0 0
      %585 = vmatprep.subr.bf16.mxu0 0
      %586 = vmatpush1.bf16.msra.mxu0 0
      %587 = vmatprep.subr.bf16.mxu0 0
      %588 = vmatpush1.bf16.msra.mxu0 0
      %589 = vmatprep.subr.bf16.mxu0 0
      %590 = vmatpush1.bf16.msra.mxu0 0
      %591 = vmatprep.subr.bf16.mxu0 0
      %592 = vmatpush1.bf16.msra.mxu0 0
      %593 = vmatprep.subr.bf16.mxu0 0
      %594 = vmatpush1.bf16.msra.mxu0 0
      %595 = vmatprep.subr.bf16.mxu0 0
      %596 = vmatpush1.bf16.msra.mxu0 0
      %597 = vmatprep.subr.bf16.mxu0 0
      %598 = vmatpush1.bf16.msra.mxu0 0
      %599 = vmatprep.subr.bf16.mxu0 0
      %600 = vmatpush1.bf16.msra.mxu0 0
      %601 = vmatprep.subr.bf16.mxu0 0
      %602 = vmatpush1.bf16.msra.mxu0 0
      %603 = vmatprep.subr.bf16.mxu0 0
      %604 = vmatpush1.bf16.msra.mxu0 0
      %605 = vmatprep.subr.bf16.mxu0 0
      %606 = vmatpush1.bf16.msra.mxu0 0
      %607 = vmatprep.subr.bf16.mxu0 0
      %608 = vmatpush1.bf16.msra.mxu0 0
      %609 = vmatprep.subr.bf16.mxu0 0
      %610 = vmatpush1.bf16.msra.mxu0 0
      %611 = vmatprep.mubr.bf16.mxu0 0
      %612 = vmatmul.mubr.bf16.gmra.mrb[0].mxu0 %v536
      %v613 = vpop.f32.mrb[0].mxu0
      %v614 = vadd.f32 0.0, %v613
      %v615 = vpop.f32.mrb[0].mxu0
      %v616 = vpop.f32.mrb[0].mxu0
      %v617 = vpop.f32.mrb[0].mxu0
      %618 = vdwg.mxu0
      %v620 = vsel %vm222, %v532, 0
      %622 = vmatprep.subr.bf16.mxu0 %v197
      %623 = vmatpush1.bf16.msra.mxu0 %v196
      %624 = vmatprep.subr.bf16.mxu0 %v327
      %625 = vmatpush1.bf16.msra.mxu0 %v324
      %626 = vmatprep.subr.bf16.mxu0 0
      %627 = vmatpush1.bf16.msra.mxu0 0
      %628 = vmatprep.subr.bf16.mxu0 0
      %629 = vmatpush1.bf16.msra.mxu0 0
      %630 = vmatprep.subr.bf16.mxu0 0
      %631 = vmatpush1.bf16.msra.mxu0 0
      %632 = vmatprep.subr.bf16.mxu0 0
      %633 = vmatpush1.bf16.msra.mxu0 0
      %634 = vmatprep.subr.bf16.mxu0 0
      %635 = vmatpush1.bf16.msra.mxu0 0
      %636 = vmatprep.subr.bf16.mxu0 0
      %637 = vmatpush1.bf16.msra.mxu0 0
      %638 = vmatprep.subr.bf16.mxu0 0
      %639 = vmatpush1.bf16.msra.mxu0 0
      %640 = vmatprep.subr.bf16.mxu0 0
      %641 = vmatpush1.bf16.msra.mxu0 0
      %642 = vmatprep.subr.bf16.mxu0 0
      %643 = vmatpush1.bf16.msra.mxu0 0
      %644 = vmatprep.subr.bf16.mxu0 0
      %645 = vmatpush1.bf16.msra.mxu0 0
      %646 = vmatprep.subr.bf16.mxu0 0
      %647 = vmatpush1.bf16.msra.mxu0 0
      %648 = vmatprep.subr.bf16.mxu0 0
      %649 = vmatpush1.bf16.msra.mxu0 0
      %650 = vmatprep.subr.bf16.mxu0 0
      %651 = vmatpush1.bf16.msra.mxu0 0
      %652 = vmatprep.subr.bf16.mxu0 0
      %653 = vmatpush1.bf16.msra.mxu0 0
      %654 = vmatprep.mubr.bf16.mxu0 0
      %655 = vmatmul.mubr.bf16.gmra.mrb[0].mxu0 %v620
      %v656 = vpop.f32.mrb[0].mxu0
      %v657 = vadd.f32 %v573, %v656
      %v658 = vpop.f32.mrb[0].mxu0
      %v659 = vadd.f32 %v575, %v658
      %v660 = vpop.f32.mrb[0].mxu0
      %v661 = vpop.f32.mrb[0].mxu0
      %662 = vdwg.mxu0
      %663 = vmatprep.subr.bf16.mxu0 0
      %664 = vmatpush1.bf16.msra.mxu0 %v198
      %665 = vmatprep.subr.bf16.mxu0 0
      %666 = vmatpush1.bf16.msra.mxu0 %v330
      %667 = vmatprep.subr.bf16.mxu0 0
      %668 = vmatpush1.bf16.msra.mxu0 0
      %669 = vmatprep.subr.bf16.mxu0 0
      %670 = vmatpush1.bf16.msra.mxu0 0
      %671 = vmatprep.subr.bf16.mxu0 0
      %672 = vmatpush1.bf16.msra.mxu0 0
      %673 = vmatprep.subr.bf16.mxu0 0
      %674 = vmatpush1.bf16.msra.mxu0 0
      %675 = vmatprep.subr.bf16.mxu0 0
      %676 = vmatpush1.bf16.msra.mxu0 0
      %677 = vmatprep.subr.bf16.mxu0 0
      %678 = vmatpush1.bf16.msra.mxu0 0
      %679 = vmatprep.subr.bf16.mxu0 0
      %680 = vmatpush1.bf16.msra.mxu0 0
      %681 = vmatprep.subr.bf16.mxu0 0
      %682 = vmatpush1.bf16.msra.mxu0 0
      %683 = vmatprep.subr.bf16.mxu0 0
      %684 = vmatpush1.bf16.msra.mxu0 0
      %685 = vmatprep.subr.bf16.mxu0 0
      %686 = vmatpush1.bf16.msra.mxu0 0
      %687 = vmatprep.subr.bf16.mxu0 0
      %688 = vmatpush1.bf16.msra.mxu0 0
      %689 = vmatprep.subr.bf16.mxu0 0
      %690 = vmatpush1.bf16.msra.mxu0 0
      %691 = vmatprep.subr.bf16.mxu0 0
      %692 = vmatpush1.bf16.msra.mxu0 0
      %693 = vmatprep.subr.bf16.mxu0 0
      %694 = vmatpush1.bf16.msra.mxu0 0
      %695 = vmatprep.mubr.bf16.mxu0 0
      %696 = vmatmul.mubr.bf16.gmra.mrb[0].mxu0 %v620
      %v697 = vpop.f32.mrb[0].mxu0
      %v698 = vadd.f32 %v614, %v697
      %v699 = vpop.f32.mrb[0].mxu0
      %v700 = vpop.f32.mrb[0].mxu0
      %v701 = vpop.f32.mrb[0].mxu0
      %702 = vdwg.mxu0
      %s703 = scalar_lea.vmem %s1, 28
      %v704 = vld [vmem:[%s703] sm:$0xf]
      %v706 = vsel %vm222, %v704, 0
      %708 = vmatprep.subr.bf16.mxu0 %v429
      %709 = vmatpush1.bf16.msra.mxu0 %v428
      %710 = vmatprep.subr.bf16.mxu0 %v442
      %711 = vmatpush1.bf16.msra.mxu0 %v439
      %712 = vmatprep.subr.bf16.mxu0 0
      %713 = vmatpush1.bf16.msra.mxu0 0
      %714 = vmatprep.subr.bf16.mxu0 0
      %715 = vmatpush1.bf16.msra.mxu0 0
      %716 = vmatprep.subr.bf16.mxu0 0
      %717 = vmatpush1.bf16.msra.mxu0 0
      %718 = vmatprep.subr.bf16.mxu0 0
      %719 = vmatpush1.bf16.msra.mxu0 0
      %720 = vmatprep.subr.bf16.mxu0 0
      %721 = vmatpush1.bf16.msra.mxu0 0
      %722 = vmatprep.subr.bf16.mxu0 0
      %723 = vmatpush1.bf16.msra.mxu0 0
      %724 = vmatprep.subr.bf16.mxu0 0
      %725 = vmatpush1.bf16.msra.mxu0 0
      %726 = vmatprep.subr.bf16.mxu0 0
      %727 = vmatpush1.bf16.msra.mxu0 0
      %728 = vmatprep.subr.bf16.mxu0 0
      %729 = vmatpush1.bf16.msra.mxu0 0
      %730 = vmatprep.subr.bf16.mxu0 0
      %731 = vmatpush1.bf16.msra.mxu0 0
      %732 = vmatprep.subr.bf16.mxu0 0
      %733 = vmatpush1.bf16.msra.mxu0 0
      %734 = vmatprep.subr.bf16.mxu0 0
      %735 = vmatpush1.bf16.msra.mxu0 0
      %736 = vmatprep.subr.bf16.mxu0 0
      %737 = vmatpush1.bf16.msra.mxu0 0
      %738 = vmatprep.subr.bf16.mxu0 0
      %739 = vmatpush1.bf16.msra.mxu0 0
      %740 = vmatprep.mubr.bf16.mxu0 0
      %741 = vmatmul.mubr.bf16.gmra.mrb[0].mxu0 %v706
      %v742 = vpop.f32.mrb[0].mxu0
      %v743 = vadd.f32 0.0, %v742
      %v744 = vpop.f32.mrb[0].mxu0
      %v745 = vadd.f32 0.0, %v744
      %v746 = vpop.f32.mrb[0].mxu0
      %v747 = vpop.f32.mrb[0].mxu0
      %748 = vdwg.mxu0
      %749 = vmatprep.subr.bf16.mxu0 0
      %750 = vmatpush1.bf16.msra.mxu0 %v420
      %751 = vmatprep.subr.bf16.mxu0 0
      %752 = vmatpush1.bf16.msra.mxu0 %v445
      %753 = vmatprep.subr.bf16.mxu0 0
      %754 = vmatpush1.bf16.msra.mxu0 0
      %755 = vmatprep.subr.bf16.mxu0 0
      %756 = vmatpush1.bf16.msra.mxu0 0
      %757 = vmatprep.subr.bf16.mxu0 0
      %758 = vmatpush1.bf16.msra.mxu0 0
      %759 = vmatprep.subr.bf16.mxu0 0
      %760 = vmatpush1.bf16.msra.mxu0 0
      %761 = vmatprep.subr.bf16.mxu0 0
      %762 = vmatpush1.bf16.msra.mxu0 0
      %763 = vmatprep.subr.bf16.mxu0 0
      %764 = vmatpush1.bf16.msra.mxu0 0
      %765 = vmatprep.subr.bf16.mxu0 0
      %766 = vmatpush1.bf16.msra.mxu0 0
      %767 = vmatprep.subr.bf16.mxu0 0
      %768 = vmatpush1.bf16.msra.mxu0 0
      %769 = vmatprep.subr.bf16.mxu0 0
      %770 = vmatpush1.bf16.msra.mxu0 0
      %771 = vmatprep.subr.bf16.mxu0 0
      %772 = vmatpush1.bf16.msra.mxu0 0
      %773 = vmatprep.subr.bf16.mxu0 0
      %774 = vmatpush1.bf16.msra.mxu0 0
      %775 = vmatprep.subr.bf16.mxu0 0
      %776 = vmatpush1.bf16.msra.mxu0 0
      %777 = vmatprep.subr.bf16.mxu0 0
      %778 = vmatpush1.bf16.msra.mxu0 0
      %779 = vmatprep.subr.bf16.mxu0 0
      %780 = vmatpush1.bf16.msra.mxu0 0
      %781 = vmatprep.mubr.bf16.mxu0 0
      %782 = vmatmul.mubr.bf16.gmra.mrb[0].mxu0 %v706
      %v783 = vpop.f32.mrb[0].mxu0
      %v784 = vadd.f32 0.0, %v783
      %v785 = vpop.f32.mrb[0].mxu0
      %v786 = vpop.f32.mrb[0].mxu0
      %v787 = vpop.f32.mrb[0].mxu0
      %788 = vdwg.mxu0
      %v789 = vadd.f32 %v657, %v743
      %v790 = vadd.f32 %v659, %v745
      %v791 = vadd.f32 %v698, %v784
      %s792 = scalar_lea.vmem %s1, 8
      %v793 = vld [vmem:[%s792] sm:$0xf]
      %s794 = scalar_lea.vmem %s1, 20
      %v795 = vld [vmem:[%s794] sm:$0xf]
      %v797 = vsel %vm222, %v795, 0
      %799 = vmatprep.subr.bf16.mxu0 %v216
      %800 = vmatpush1.bf16.msra.mxu0 %v215
      %801 = vmatprep.subr.bf16.mxu0 %v231
      %802 = vmatpush1.bf16.msra.mxu0 %v228
      %803 = vmatprep.subr.bf16.mxu0 0
      %804 = vmatpush1.bf16.msra.mxu0 0
      %805 = vmatprep.subr.bf16.mxu0 0
      %806 = vmatpush1.bf16.msra.mxu0 0
      %807 = vmatprep.subr.bf16.mxu0 0
      %808 = vmatpush1.bf16.msra.mxu0 0
      %809 = vmatprep.subr.bf16.mxu0 0
      %810 = vmatpush1.bf16.msra.mxu0 0
      %811 = vmatprep.subr.bf16.mxu0 0
      %812 = vmatpush1.bf16.msra.mxu0 0
      %813 = vmatprep.subr.bf16.mxu0 0
      %814 = vmatpush1.bf16.msra.mxu0 0
      %815 = vmatprep.subr.bf16.mxu0 0
      %816 = vmatpush1.bf16.msra.mxu0 0
      %817 = vmatprep.subr.bf16.mxu0 0
      %818 = vmatpush1.bf16.msra.mxu0 0
      %819 = vmatprep.subr.bf16.mxu0 0
      %820 = vmatpush1.bf16.msra.mxu0 0
      %821 = vmatprep.subr.bf16.mxu0 0
      %822 = vmatpush1.bf16.msra.mxu0 0
      %823 = vmatprep.subr.bf16.mxu0 0
      %824 = vmatpush1.bf16.msra.mxu0 0
      %825 = vmatprep.subr.bf16.mxu0 0
      %826 = vmatpush1.bf16.msra.mxu0 0
      %827 = vmatprep.subr.bf16.mxu0 0
      %828 = vmatpush1.bf16.msra.mxu0 0
      %829 = vmatprep.subr.bf16.mxu0 0
      %830 = vmatpush1.bf16.msra.mxu0 0
      %831 = vmatprep.mubr.bf16.mxu0 0
      %832 = vmatmul.mubr.bf16.gmra.mrb[0].mxu0 %v797
      %v833 = vpop.f32.mrb[0].mxu0
      %v834 = vadd.f32 0.0, %v833
      %v835 = vpop.f32.mrb[0].mxu0
      %v836 = vadd.f32 0.0, %v835
      %v837 = vpop.f32.mrb[0].mxu0
      %v838 = vpop.f32.mrb[0].mxu0
      %839 = vdwg.mxu0
      %840 = vmatprep.subr.bf16.mxu0 0
      %841 = vmatpush1.bf16.msra.mxu0 %v207
      %842 = vmatprep.subr.bf16.mxu0 0
      %843 = vmatpush1.bf16.msra.mxu0 %v234
      %844 = vmatprep.subr.bf16.mxu0 0
      %845 = vmatpush1.bf16.msra.mxu0 0
      %846 = vmatprep.subr.bf16.mxu0 0
      %847 = vmatpush1.bf16.msra.mxu0 0
      %848 = vmatprep.subr.bf16.mxu0 0
      %849 = vmatpush1.bf16.msra.mxu0 0
      %850 = vmatprep.subr.bf16.mxu0 0
      %851 = vmatpush1.bf16.msra.mxu0 0
      %852 = vmatprep.subr.bf16.mxu0 0
      %853 = vmatpush1.bf16.msra.mxu0 0
      %854 = vmatprep.subr.bf16.mxu0 0
      %855 = vmatpush1.bf16.msra.mxu0 0
      %856 = vmatprep.subr.bf16.mxu0 0
      %857 = vmatpush1.bf16.msra.mxu0 0
      %858 = vmatprep.subr.bf16.mxu0 0
      %859 = vmatpush1.bf16.msra.mxu0 0
      %860 = vmatprep.subr.bf16.mxu0 0
      %861 = vmatpush1.bf16.msra.mxu0 0
      %862 = vmatprep.subr.bf16.mxu0 0
      %863 = vmatpush1.bf16.msra.mxu0 0
      %864 = vmatprep.subr.bf16.mxu0 0
      %865 = vmatpush1.bf16.msra.mxu0 0
      %866 = vmatprep.subr.bf16.mxu0 0
      %867 = vmatpush1.bf16.msra.mxu0 0
      %868 = vmatprep.subr.bf16.mxu0 0
      %869 = vmatpush1.bf16.msra.mxu0 0
      %870 = vmatprep.subr.bf16.mxu0 0
      %871 = vmatpush1.bf16.msra.mxu0 0
      %872 = vmatprep.mubr.bf16.mxu0 0
      %873 = vmatmul.mubr.bf16.gmra.mrb[0].mxu0 %v797
      %v874 = vpop.f32.mrb[0].mxu0
      %v875 = vadd.f32 0.0, %v874
      %v876 = vpop.f32.mrb[0].mxu0
      %v877 = vpop.f32.mrb[0].mxu0
      %v878 = vpop.f32.mrb[0].mxu0
      %879 = vdwg.mxu0
      %v881 = vsel %vm222, %v793, 0
      %883 = vmatprep.subr.bf16.mxu0 %v197
      %884 = vmatpush1.bf16.msra.mxu0 %v196
      %885 = vmatprep.subr.bf16.mxu0 %v327
      %886 = vmatpush1.bf16.msra.mxu0 %v324
      %887 = vmatprep.subr.bf16.mxu0 0
      %888 = vmatpush1.bf16.msra.mxu0 0
      %889 = vmatprep.subr.bf16.mxu0 0
      %890 = vmatpush1.bf16.msra.mxu0 0
      %891 = vmatprep.subr.bf16.mxu0 0
      %892 = vmatpush1.bf16.msra.mxu0 0
      %893 = vmatprep.subr.bf16.mxu0 0
      %894 = vmatpush1.bf16.msra.mxu0 0
      %895 = vmatprep.subr.bf16.mxu0 0
      %896 = vmatpush1.bf16.msra.mxu0 0
      %897 = vmatprep.subr.bf16.mxu0 0
      %898 = vmatpush1.bf16.msra.mxu0 0
      %899 = vmatprep.subr.bf16.mxu0 0
      %900 = vmatpush1.bf16.msra.mxu0 0
      %901 = vmatprep.subr.bf16.mxu0 0
      %902 = vmatpush1.bf16.msra.mxu0 0
      %903 = vmatprep.subr.bf16.mxu0 0
      %904 = vmatpush1.bf16.msra.mxu0 0
      %905 = vmatprep.subr.bf16.mxu0 0
      %906 = vmatpush1.bf16.msra.mxu0 0
      %907 = vmatprep.subr.bf16.mxu0 0
      %908 = vmatpush1.bf16.msra.mxu0 0
      %909 = vmatprep.subr.bf16.mxu0 0
      %910 = vmatpush1.bf16.msra.mxu0 0
      %911 = vmatprep.subr.bf16.mxu0 0
      %912 = vmatpush1.bf16.msra.mxu0 0
      %913 = vmatprep.subr.bf16.mxu0 0
      %914 = vmatpush1.bf16.msra.mxu0 0
      %915 = vmatprep.mubr.bf16.mxu0 0
      %916 = vmatmul.mubr.bf16.gmra.mrb[0].mxu0 %v881
      %v917 = vpop.f32.mrb[0].mxu0
      %v918 = vadd.f32 %v834, %v917
      %v919 = vpop.f32.mrb[0].mxu0
      %v920 = vadd.f32 %v836, %v919
      %v921 = vpop.f32.mrb[0].mxu0
      %v922 = vpop.f32.mrb[0].mxu0
      %923 = vdwg.mxu0
      %924 = vmatprep.subr.bf16.mxu0 0
      %925 = vmatpush1.bf16.msra.mxu0 %v198
      %926 = vmatprep.subr.bf16.mxu0 0
      %927 = vmatpush1.bf16.msra.mxu0 %v330
      %928 = vmatprep.subr.bf16.mxu0 0
      %929 = vmatpush1.bf16.msra.mxu0 0
      %930 = vmatprep.subr.bf16.mxu0 0
      %931 = vmatpush1.bf16.msra.mxu0 0
      %932 = vmatprep.subr.bf16.mxu0 0
      %933 = vmatpush1.bf16.msra.mxu0 0
      %934 = vmatprep.subr.bf16.mxu0 0
      %935 = vmatpush1.bf16.msra.mxu0 0
      %936 = vmatprep.subr.bf16.mxu0 0
      %937 = vmatpush1.bf16.msra.mxu0 0
      %938 = vmatprep.subr.bf16.mxu0 0
      %939 = vmatpush1.bf16.msra.mxu0 0
      %940 = vmatprep.subr.bf16.mxu0 0
      %941 = vmatpush1.bf16.msra.mxu0 0
      %942 = vmatprep.subr.bf16.mxu0 0
      %943 = vmatpush1.bf16.msra.mxu0 0
      %944 = vmatprep.subr.bf16.mxu0 0
      %945 = vmatpush1.bf16.msra.mxu0 0
      %946 = vmatprep.subr.bf16.mxu0 0
      %947 = vmatpush1.bf16.msra.mxu0 0
      %948 = vmatprep.subr.bf16.mxu0 0
      %949 = vmatpush1.bf16.msra.mxu0 0
      %950 = vmatprep.subr.bf16.mxu0 0
      %951 = vmatpush1.bf16.msra.mxu0 0
      %952 = vmatprep.subr.bf16.mxu0 0
      %953 = vmatpush1.bf16.msra.mxu0 0
      %954 = vmatprep.subr.bf16.mxu0 0
      %955 = vmatpush1.bf16.msra.mxu0 0
      %956 = vmatprep.mubr.bf16.mxu0 0
      %957 = vmatmul.mubr.bf16.gmra.mrb[0].mxu0 %v881
      %v958 = vpop.f32.mrb[0].mxu0
      %v959 = vadd.f32 %v875, %v958
      %v960 = vpop.f32.mrb[0].mxu0
      %v961 = vpop.f32.mrb[0].mxu0
      %v962 = vpop.f32.mrb[0].mxu0
      %963 = vdwg.mxu0
      %s964 = scalar_lea.vmem %s1, 32
      %v965 = vld [vmem:[%s964] sm:$0xf]
      %v967 = vsel %vm222, %v965, 0
      %969 = vmatprep.subr.bf16.mxu0 %v429
      %970 = vmatpush1.bf16.msra.mxu0 %v428
      %971 = vmatprep.subr.bf16.mxu0 %v442
      %972 = vmatpush1.bf16.msra.mxu0 %v439
      %973 = vmatprep.subr.bf16.mxu0 0
      %974 = vmatpush1.bf16.msra.mxu0 0
      %975 = vmatprep.subr.bf16.mxu0 0
      %976 = vmatpush1.bf16.msra.mxu0 0
      %977 = vmatprep.subr.bf16.mxu0 0
      %978 = vmatpush1.bf16.msra.mxu0 0
      %979 = vmatprep.subr.bf16.mxu0 0
      %980 = vmatpush1.bf16.msra.mxu0 0
      %981 = vmatprep.subr.bf16.mxu0 0
      %982 = vmatpush1.bf16.msra.mxu0 0
      %983 = vmatprep.subr.bf16.mxu0 0
      %984 = vmatpush1.bf16.msra.mxu0 0
      %985 = vmatprep.subr.bf16.mxu0 0
      %986 = vmatpush1.bf16.msra.mxu0 0
      %987 = vmatprep.subr.bf16.mxu0 0
      %988 = vmatpush1.bf16.msra.mxu0 0
      %989 = vmatprep.subr.bf16.mxu0 0
      %990 = vmatpush1.bf16.msra.mxu0 0
      %991 = vmatprep.subr.bf16.mxu0 0
      %992 = vmatpush1.bf16.msra.mxu0 0
      %993 = vmatprep.subr.bf16.mxu0 0
      %994 = vmatpush1.bf16.msra.mxu0 0
      %995 = vmatprep.subr.bf16.mxu0 0
      %996 = vmatpush1.bf16.msra.mxu0 0
      %997 = vmatprep.subr.bf16.mxu0 0
      %998 = vmatpush1.bf16.msra.mxu0 0
      %999 = vmatprep.subr.bf16.mxu0 0
      %1000 = vmatpush1.bf16.msra.mxu0 0
      %1001 = vmatprep.mubr.bf16.mxu0 0
      %1002 = vmatmul.mubr.bf16.gmra.mrb[0].mxu0 %v967
      %v1003 = vpop.f32.mrb[0].mxu0
      %v1004 = vadd.f32 0.0, %v1003
      %v1005 = vpop.f32.mrb[0].mxu0
      %v1006 = vadd.f32 0.0, %v1005
      %v1007 = vpop.f32.mrb[0].mxu0
      %v1008 = vpop.f32.mrb[0].mxu0
      %1009 = vdwg.mxu0
      %1010 = vmatprep.subr.bf16.mxu0 0
      %1011 = vmatpush1.bf16.msra.mxu0 %v420
      %1012 = vmatprep.subr.bf16.mxu0 0
      %1013 = vmatpush1.bf16.msra.mxu0 %v445
      %1014 = vmatprep.subr.bf16.mxu0 0
      %1015 = vmatpush1.bf16.msra.mxu0 0
      %1016 = vmatprep.subr.bf16.mxu0 0
      %1017 = vmatpush1.bf16.msra.mxu0 0
      %1018 = vmatprep.subr.bf16.mxu0 0
      %1019 = vmatpush1.bf16.msra.mxu0 0
      %1020 = vmatprep.subr.bf16.mxu0 0
      %1021 = vmatpush1.bf16.msra.mxu0 0
      %1022 = vmatprep.subr.bf16.mxu0 0
      %1023 = vmatpush1.bf16.msra.mxu0 0
      %1024 = vmatprep.subr.bf16.mxu0 0
      %1025 = vmatpush1.bf16.msra.mxu0 0
      %1026 = vmatprep.subr.bf16.mxu0 0
      %1027 = vmatpush1.bf16.msra.mxu0 0
      %1028 = vmatprep.subr.bf16.mxu0 0
      %1029 = vmatpush1.bf16.msra.mxu0 0
      %1030 = vmatprep.subr.bf16.mxu0 0
      %1031 = vmatpush1.bf16.msra.mxu0 0
      %1032 = vmatprep.subr.bf16.mxu0 0
      %1033 = vmatpush1.bf16.msra.mxu0 0
      %1034 = vmatprep.subr.bf16.mxu0 0
      %1035 = vmatpush1.bf16.msra.mxu0 0
      %1036 = vmatprep.subr.bf16.mxu0 0
      %1037 = vmatpush1.bf16.msra.mxu0 0
      %1038 = vmatprep.subr.bf16.mxu0 0
      %1039 = vmatpush1.bf16.msra.mxu0 0
      %1040 = vmatprep.subr.bf16.mxu0 0
      %1041 = vmatpush1.bf16.msra.mxu0 0
      %1042 = vmatprep.mubr.bf16.mxu0 0
      %1043 = vmatmul.mubr.bf16.gmra.mrb[0].mxu0 %v967
      %v1044 = vpop.f32.mrb[0].mxu0
      %v1045 = vadd.f32 0.0, %v1044
      %v1046 = vpop.f32.mrb[0].mxu0
      %v1047 = vpop.f32.mrb[0].mxu0
      %v1048 = vpop.f32.mrb[0].mxu0
      %1049 = vdwg.mxu0
      %v1050 = vadd.f32 %v918, %v1004
      %v1051 = vadd.f32 %v920, %v1006
      %v1052 = vadd.f32 %v959, %v1045
      %1056 = vrot.lane.b32.xlu0 %v789, 127
      %v1057 = vpop.permute.xlu0 %1056
      %1058 = vrot.lane.b32.xlu0 %v790, 127
      %v1059 = vpop.permute.xlu0 %1058
      %1060 = vrot.lane.b32.xlu0 %v791, 127
      %v1061 = vpop.permute.xlu0 %1060
      %vm1062 = vcmask 1039360
      %v1063 = vsel %vm1062, %v1057, %v1059
      %v1064 = vsel %vm1062, %v1059, %v1061
      %v1068 = vadd.f32 %v528, %v1063
      %v1069 = vadd.f32 %v529, %v1064
      %v1070 = vadd.f32 %v530, %v1061
      %1074 = vrot.lane.b32.xlu0 %v1050, 126
      %v1075 = vpop.permute.xlu0 %1074
      %1076 = vrot.lane.b32.xlu0 %v1051, 126
      %v1077 = vpop.permute.xlu0 %1076
      %1078 = vrot.lane.b32.xlu0 %v1052, 126
      %v1079 = vpop.permute.xlu0 %1078
      %vm1080 = vcmask 1031168
      %v1081 = vsel %vm1080, %v1075, %v1077
      %v1082 = vsel %vm1080, %v1077, %v1079
      %v1086 = vadd.f32 %v1068, %v1081
      %v1087 = vadd.f32 %v1069, %v1082
      %v1088 = vadd.f32 %v1070, %v1079
      %v1089 = vld [vmem:[%s2] sm:$0xff]
      %1091 = vset.pattern.permute.xlu0 0
      %1092 = vperm.xlu0 %1091, %v1089
      %v1093 = vpop.permute.xlu0 %1092
      %v1095 = vadd.f32 %v1086, %v1093
      %v1096 = vadd.f32 %v1087, %v1093
      %v1097 = vadd.f32 %v1088, %v1093
      %vm1098 = vcmp.ge.f32.partialorder %v1095, 0.0
      %vm1099 = vcmp.ge.f32.partialorder %v1096, 0.0
      %vm1100 = vcmp.ge.f32.partialorder %v1097, 0.0
      %v1101 = vmul.f32 %v1095, 0.01
      %v1102 = vmul.f32 %v1096, 0.01
      %v1103 = vmul.f32 %v1097, 0.01
      %v1104 = vsel %vm1098, %v1095, %v1101
      %v1105 = vsel %vm1099, %v1096, %v1102
      %v1106 = vsel %vm1100, %v1097, %v1103
      %1107 = vset.pattern.permute.xlu0 1
      %1108 = vperm.xlu0 %1107, %v1089
      %v1109 = vpop.permute.xlu0 %1108
      %v1111 = vmul.f32 %v1104, %v1109
      %v1112 = vmul.f32 %v1105, %v1109
      %v1113 = vmul.f32 %v1106, %v1109
      %1114 = vset.pattern.permute.xlu0 2
      %1115 = vperm.xlu0 %1114, %v1089
      %v1116 = vpop.permute.xlu0 %1115
      %v1118 = vadd.f32 %v1111, %v1116
      %v1119 = vadd.f32 %v1112, %v1116
      %v1120 = vadd.f32 %v1113, %v1116
      %1121 = vst [vmem:[%s170] sm:$0xff] %v1118
      %1122 = vst [vmem:[%s170 + $0x8] sm:$0xff] %v1119
      %vm1123 = vcmask 261120
      %1124 = vst.msk [vmem:[%s170 + $0x10] sm:$0xff] %vm1123, %v1120
      %p1125 = scmp.lt.s32.totalorder %s14, 1
      %s1126 = scalar_select %p1125, %s14, 1
      %s1127 = smul.addr %s1126, 3
      %s1128 = smul.addr %s1127, 8
      %s1129 = scalar_lea.vmem %s3, %s1128
      // Predicated region
      $region33: #{upblock_forward.1} parent=31 // pred_check
        %p1130 = pneg %p100
      $region34: #{upblock_forward.1} parent=31 // pred_check_branch
        %1132 = sbr.rel (%p1130) target = $region36
      $region35: #{upblock_forward.1} parent=31 // pred_region
        _
      $region36: #{upblock_forward.1} parent=31 // pred_fallthru
        _
    $region32: #{upblock_forward.1} parent=5 // pred_fallthru
      _
    %p1133 = scmp.le.s32.totalorder 2, %s9
    // Predicated region
    $region37: #{upblock_forward.1} parent=5 // pred_check
      %p1134 = pneg %p1133
    $region38: #{upblock_forward.1} parent=5 // pred_check_branch
      %1136 = sbr.rel (%p1134) target = $region40
    $region39: #{upblock_forward.1} parent=5 // pred_region
      %s1137 = ssub.s32 %s9, 2
      // Predicated region
      $region41: #{upblock_forward.1} parent=39 // pred_check
        %p1138 = pneg %p106
      $region42: #{upblock_forward.1} parent=39 // pred_check_branch
        %1140 = sbr.rel (%p1138) target = $region44
      $region43: #{upblock_forward.1} parent=39 // pred_region
        %p1141 = scmp.lt.s32.totalorder %s15, 1
        %s1142 = scalar_select %p1141, %s15, 1
        %s1143 = smul.addr %s1142, 3
        %s1144 = smul.addr %s1143, 8
        %s1145 = scalar_lea.vmem %s3, %s1144
      $region44: #{upblock_forward.1} parent=39 // pred_fallthru
        _
    $region40: #{upblock_forward.1} parent=5 // pred_fallthru
      _
  $region6: #{upblock_forward.1} parent=0 // loop_footer
    %s13 = sadd.s32 1, %s9
  $region7: #{upblock_forward.1} parent=0 // loop_footer_branch
    %8 = sbr.rel target = $region3
  $region8: #{upblock_forward.1} parent=0 // loop_exit
    _

</llo_original>
